<compile_context>
chip_gen: v5e
topology: v5e:2x2
jax: 0.10.0
libtpu: 0.0.40
codegen_flags: <defaults>
</compile_context>

<pallas_src>
import jax
import jax.numpy as jnp
from jax.experimental import pallas as pl
from jax.experimental.pallas import tpu as pltpu


def _round_up(x, m):
    return (x + m - 1) // m * m


def mi_disc_kernel(zdf_ref, zos_ref, w1df_ref, w1os_ref, b1_ref, w2_ref,
                   b2_ref, o_ref):
    """Fused (Linear -> ReLU -> Linear) on one batch tile.

    zdf_ref, zos_ref   : [TB, D]   bf16 (or f32) activation tiles, streamed
    w1df_ref, w1os_ref : [D, H]    first-layer weight, split along input dim
    b1_ref, w2_ref     : [1, H]    f32 first-layer bias / second-layer row
    b2_ref             : (1, 1)    f32 scalar bias in SMEM
    o_ref              : [TB, 1]   f32
    """
    # First layer: split-K matmuls replace cat([z_df, z_os]) @ W1.
    # (bf16 x bf16 -> f32 accumulation on the MXU; exact for bf16 inputs.)
    h = jnp.dot(zdf_ref[...], w1df_ref[...], preferred_element_type=jnp.float32)
    h = h + jnp.dot(zos_ref[...], w1os_ref[...],
                    preferred_element_type=jnp.float32)
    h = jnp.maximum(h + b1_ref[...], 0.0)                    # ReLU, [TB, H] f32

    # Second layer: VPU mul + XLU lane reduction (cheaper than an N=1 matvec
    # while the kernel is HBM-bound).
    o = jnp.sum(h * w2_ref[...], axis=-1, keepdims=True) + b2_ref[0, 0]
    o_ref[...] = o.astype(o_ref.dtype)


def mi_discriminator(z_df, z_os, params, *, block_b=4096, min_tiles=2):
    """MIDiscriminator forward. params = (w1_df, w1_os, b1, w2_row, b2).

    z_df / z_os are expected to arrive already in their streaming dtype
    (bf16 recommended) -- no cast is performed here.
    """
    w1_df, w1_os, b1, w2_row, b2 = params
    B, D = z_df.shape
    H = w1_df.shape[1]

    # Sublane packing: 8 rows for f32, 16 for bf16 (32 for int8/fp8).
    sub = 8 * max(1, 4 // z_df.dtype.itemsize)

    # Batch tile: as large as reasonable (amortizes the ~0.35 us per-grid-step
    # overhead), but capped at ceil(B / min_tiles) so v7x's two TensorCores
    # both get work under dimension_semantics=("parallel",).
    tb = min(block_b, _round_up(pl.cdiv(B, min_tiles), sub))
    tb = max(sub, tb)
    grid = (pl.cdiv(B, tb),)

    act_bytes = z_df.dtype.itemsize
    w_bytes = w1_df.dtype.itemsize
    cost = pl.CostEstimate(
        flops=2 * B * (2 * D) * H + 2 * B * H,
        transcendentals=0,
        bytes_accessed=(2 * B * D * act_bytes          # activation streams
                        + 2 * D * H * w_bytes          # W1 halves
                        + 2 * H * 4                    # b1, w2 row
                        + B * 4),                      # output column
    )

    out = pl.pallas_call(
        mi_disc_kernel,
        out_shape=jax.ShapeDtypeStruct((B, 1), jnp.float32),
        grid=grid,
        in_specs=[
            pl.BlockSpec((tb, D), lambda i: (i, 0)),   # z_df tile (streamed)
            pl.BlockSpec((tb, D), lambda i: (i, 0)),   # z_os tile (streamed)
            pl.BlockSpec((D, H), lambda i: (0, 0)),    # W1[:D]  (VMEM-resident)
            pl.BlockSpec((D, H), lambda i: (0, 0)),    # W1[D:]  (VMEM-resident)
            pl.BlockSpec((1, H), lambda i: (0, 0)),    # b1
            pl.BlockSpec((1, H), lambda i: (0, 0)),    # w2 as a row
            pl.BlockSpec(memory_space=pltpu.MemorySpace.SMEM),  # b2 scalar
        ],
        out_specs=pl.BlockSpec((tb, 1), lambda i: (i, 0)),
        compiler_params=pltpu.CompilerParams(
            # Independent batch tiles -> shard across v7x's 2 TensorCores.
            dimension_semantics=("parallel",),
            # Big tiles still double-buffer on v5e's 16 MiB default scoped
            # limit; stays well under v7x's 64 MiB physical VMEM.
            vmem_limit_bytes=48 * 1024 * 1024,
        ),
        cost_estimate=cost,
    )(z_df, z_os, w1_df, w1_os, b1, w2_row, b2)
    return out


def init_params(key, dim, hidden, *, w_dtype=jnp.bfloat16):
    """Deterministic synthetic parameters (nn.Linear-like uniform init),
    already in the split / row layout and streaming dtype the kernel wants."""
    k1, k2, k3, k4 = jax.random.split(key, 4)
    fan_in1 = dim * 2
    bound1 = 1.0 / jnp.sqrt(fan_in1)
    w1 = jax.random.uniform(k1, (fan_in1, hidden), jnp.float32, -bound1, bound1)
    b1 = jax.random.uniform(k2, (1, hidden), jnp.float32, -bound1, bound1)
    bound2 = 1.0 / jnp.sqrt(hidden)
    w2_row = jax.random.uniform(k3, (1, hidden), jnp.float32, -bound2, bound2)
    b2 = jax.random.uniform(k4, (1, 1), jnp.float32, -bound2, bound2)
    w1_df = w1[:dim].astype(w_dtype)    # wrapper-side split of W1 (one-time)
    w1_os = w1[dim:].astype(w_dtype)
    return w1_df, w1_os, b1, w2_row, b2


def reference(z_df, z_os, params):
    """Pure-JAX ground truth, written exactly like the PyTorch module
    (concat -> Linear -> ReLU -> Linear), evaluated in full f32."""
    w1_df, w1_os, b1, w2_row, b2 = params
    x = jnp.concatenate([z_df.astype(jnp.float32), z_os.astype(jnp.float32)],
                        axis=-1)
    w1 = jnp.concatenate([w1_df.astype(jnp.float32), w1_os.astype(jnp.float32)],
                         axis=0)
    h = jnp.maximum(
        jnp.dot(x, w1, precision=jax.lax.Precision.HIGHEST) + b1, 0.0)
    return jnp.dot(h, w2_row.T, precision=jax.lax.Precision.HIGHEST) + b2


if __name__ == "__main__":
    dim, hidden = 64, 128   # small shapes consistent with the module

    key = jax.random.PRNGKey(0)
    kp, ka, kb, kc, kd = jax.random.split(key, 5)
    params = init_params(kp, dim, hidden)

    # --- small case (two 16-row tiles; exercises the min_tiles split) ---
    B = 32
    z_df = jax.random.normal(ka, (B, dim), jnp.float32).astype(jnp.bfloat16)
    z_os = jax.random.normal(kb, (B, dim), jnp.float32).astype(jnp.bfloat16)
    out = jax.block_until_ready(mi_discriminator(z_df, z_os, params))
    ref = reference(z_df, z_os, params)
    assert out.shape == (B, 1)
    assert jnp.allclose(out, ref, atol=1e-3, rtol=1e-3), (
        float(jnp.max(jnp.abs(out - ref))))

    # --- multi-tile case (exercises batch tiling + parallel grid axis) ---
    B2 = 4096
    z_df2 = jax.random.normal(kc, (B2, dim), jnp.float32).astype(jnp.bfloat16)
    z_os2 = jax.random.normal(kd, (B2, dim), jnp.float32).astype(jnp.bfloat16)
    out2 = jax.block_until_ready(mi_discriminator(z_df2, z_os2, params))
    ref2 = reference(z_df2, z_os2, params)
    assert out2.shape == (B2, 1)
    assert jnp.allclose(out2, ref2, atol=1e-3, rtol=1e-3), (
        float(jnp.max(jnp.abs(out2 - ref2))))

    print("KERNEL_OK")
</pallas_src>

<mosaic_0001>
module attributes {stable_mosaic.version = 11 : i64} {
  func.func @mi_disc_kernel(%arg0: i32, %arg1: memref<16x64xbf16, #tpu.memory_space<vmem>>, %arg2: memref<16x64xbf16, #tpu.memory_space<vmem>>, %arg3: memref<64x128xbf16, #tpu.memory_space<vmem>>, %arg4: memref<64x128xbf16, #tpu.memory_space<vmem>>, %arg5: memref<1x128xf32, #tpu.memory_space<vmem>>, %arg6: memref<1x128xf32, #tpu.memory_space<vmem>>, %arg7: memref<1x1xf32, #tpu.memory_space<smem>>, %arg8: memref<16x1xf32, #tpu.memory_space<vmem>>) attributes {dimension_semantics = [#tpu.dimension_semantics<parallel>], iteration_bounds = array<i64: 2>, scalar_prefetch = 0 : i64, scratch_operands = 0 : i64, tpu.core_type = #tpu.core_type<tc>, window_params = [{transform_indices = @transform_0, window_bounds = array<i64: 16, 64>}, {transform_indices = @transform_1, window_bounds = array<i64: 16, 64>}, {pipeline_mode = #tpu.pipeline_mode<synchronous>, transform_indices = @transform_2, window_bounds = array<i64: 64, 128>}, {pipeline_mode = #tpu.pipeline_mode<synchronous>, transform_indices = @transform_3, window_bounds = array<i64: 64, 128>}, {pipeline_mode = #tpu.pipeline_mode<synchronous>, transform_indices = @transform_4, window_bounds = array<i64: 1, 128>}, {pipeline_mode = #tpu.pipeline_mode<synchronous>, transform_indices = @transform_5, window_bounds = array<i64: 1, 128>}, {transform_indices = @transform_6, window_bounds = array<i64: 1, 1>}, {transform_indices = @transform_7, window_bounds = array<i64: 16, 1>}]} {
    %c0 = arith.constant 0 : index
    %c0_0 = arith.constant 0 : index
    %0 = vector.load %arg1[%c0, %c0_0] : memref<16x64xbf16, #tpu.memory_space<vmem>>, vector<16x64xbf16>
    %c0_1 = arith.constant 0 : index
    %c0_2 = arith.constant 0 : index
    %1 = vector.load %arg3[%c0_1, %c0_2] : memref<64x128xbf16, #tpu.memory_space<vmem>>, vector<64x128xbf16>
    %cst = arith.constant dense<0.000000e+00> : vector<16x128xf32>
    %2 = tpu.matmul %0, %1, %cst {dimension_numbers = #tpu.dot_dimension_numbers<[1], [0], [0], [1], [0, 0, 1, 1], [], []>} : vector<16x64xbf16>, vector<64x128xbf16>, vector<16x128xf32> -> vector<16x128xf32>
    %c0_3 = arith.constant 0 : index
    %c0_4 = arith.constant 0 : index
    %3 = vector.load %arg2[%c0_3, %c0_4] : memref<16x64xbf16, #tpu.memory_space<vmem>>, vector<16x64xbf16>
    %c0_5 = arith.constant 0 : index
    %c0_6 = arith.constant 0 : index
    %4 = vector.load %arg4[%c0_5, %c0_6] : memref<64x128xbf16, #tpu.memory_space<vmem>>, vector<64x128xbf16>
    %cst_7 = arith.constant dense<0.000000e+00> : vector<16x128xf32>
    %5 = tpu.matmul %3, %4, %cst_7 {dimension_numbers = #tpu.dot_dimension_numbers<[1], [0], [0], [1], [0, 0, 1, 1], [], []>} : vector<16x64xbf16>, vector<64x128xbf16>, vector<16x128xf32> -> vector<16x128xf32>
    %6 = arith.addf %2, %5 : vector<16x128xf32>
    %c0_8 = arith.constant 0 : index
    %c0_9 = arith.constant 0 : index
    %7 = vector.load %arg5[%c0_8, %c0_9] : memref<1x128xf32, #tpu.memory_space<vmem>>, vector<1x128xf32>
    %8 = vector.broadcast %7 : vector<1x128xf32> to vector<16x128xf32>
    %9 = arith.addf %6, %8 : vector<16x128xf32>
    %cst_10 = arith.constant 0.000000e+00 : f32
    %10 = vector.broadcast %cst_10 : f32 to vector<16x128xf32>
    %11 = arith.maximumf %9, %10 : vector<16x128xf32>
    %c0_11 = arith.constant 0 : index
    %c0_12 = arith.constant 0 : index
    %12 = vector.load %arg6[%c0_11, %c0_12] : memref<1x128xf32, #tpu.memory_space<vmem>>, vector<1x128xf32>
    %13 = vector.broadcast %12 : vector<1x128xf32> to vector<16x128xf32>
    %14 = arith.mulf %11, %13 : vector<16x128xf32>
    %cst_13 = arith.constant dense<0.000000e+00> : vector<16xf32>
    %15 = vector.multi_reduction <add>, %14, %cst_13 [1] : vector<16x128xf32> to vector<16xf32>
    %16 = vector.shape_cast %15 : vector<16xf32> to vector<16x1xf32>
    %c0_14 = arith.constant 0 : index
    %c0_15 = arith.constant 0 : index
    %17 = memref.load %arg7[%c0_14, %c0_15] : memref<1x1xf32, #tpu.memory_space<smem>>
    %18 = vector.broadcast %17 : f32 to vector<16x1xf32>
    %19 = arith.addf %16, %18 : vector<16x1xf32>
    %c0_16 = arith.constant 0 : index
    %c0_17 = arith.constant 0 : index
    %20 = vector.load %arg8[%c0_16, %c0_17] : memref<16x1xf32, #tpu.memory_space<vmem>>, vector<16x1xf32>
    tpu.vector_store %arg8[%c0_16, %c0_17], %19 {strides = array<i32>} : memref<16x1xf32, #tpu.memory_space<vmem>>, vector<16x1xf32>,
    return
  }
  func.func @transform_0(%arg0: i32) -> (i32, i32) {
    %c0_i32 = arith.constant 0 : i32
    %c0_i32_0 = arith.constant 0 : i32
    return %arg0, %c0_i32 : i32, i32
  }
  func.func @transform_1(%arg0: i32) -> (i32, i32) {
    %c0_i32 = arith.constant 0 : i32
    %c0_i32_0 = arith.constant 0 : i32
    return %arg0, %c0_i32 : i32, i32
  }
  func.func @transform_2(%arg0: i32) -> (i32, i32) {
    %c0_i32 = arith.constant 0 : i32
    %c0_i32_0 = arith.constant 0 : i32
    %c0_i32_1 = arith.constant 0 : i32
    return %c0_i32, %c0_i32_0 : i32, i32
  }
  func.func @transform_3(%arg0: i32) -> (i32, i32) {
    %c0_i32 = arith.constant 0 : i32
    %c0_i32_0 = arith.constant 0 : i32
    %c0_i32_1 = arith.constant 0 : i32
    return %c0_i32, %c0_i32_0 : i32, i32
  }
  func.func @transform_4(%arg0: i32) -> (i32, i32) {
    %c0_i32 = arith.constant 0 : i32
    %c0_i32_0 = arith.constant 0 : i32
    %c0_i32_1 = arith.constant 0 : i32
    return %c0_i32, %c0_i32_0 : i32, i32
  }
  func.func @transform_5(%arg0: i32) -> (i32, i32) {
    %c0_i32 = arith.constant 0 : i32
    %c0_i32_0 = arith.constant 0 : i32
    %c0_i32_1 = arith.constant 0 : i32
    return %c0_i32, %c0_i32_0 : i32, i32
  }
  func.func @transform_6(%arg0: i32) -> (i32, i32) {
    %c0_i32 = arith.constant 0 : i32
    %c0_i32_0 = arith.constant 0 : i32
    %c0_i32_1 = arith.constant 0 : i32
    return %c0_i32, %c0_i32_0 : i32, i32
  }
  func.func @transform_7(%arg0: i32) -> (i32, i32) {
    %c0_i32 = arith.constant 0 : i32
    %c0_i32_0 = arith.constant 0 : i32
    return %arg0, %c0_i32 : i32, i32
  }
}

</mosaic_0001>

<llo_original>
// kernel: tpu_custom_call.1
$region0: #{tpu_custom_call.1}
  #allocation0 [shape = 'u32[]', space=smem, size = 0x4, offset = 0x4, fixed_abs, tag = 'smem constant byte address 0x4 - core index']
  #allocation1 [shape = 'u32[72,128]{1,0:T(1,128)}', space=vmem, size = 0x9000, scoped, tag = 'internal scratch']
  #allocation2 [shape = 'f32[1,1]{1,0:T(1,128)S(6)}', space=smem, size = 0x200, scoped, tag = 'scoped memory for tpu_custom_call.1']
  %s0 = inlined_call_operand.hbm [shape: bf16[32,64], index: 0, kind: input, shape index: {}]
  %s1 = inlined_call_operand.hbm [shape: bf16[32,64], index: 1, kind: input, shape index: {}]
  %s2 = inlined_call_operand.hbm [shape: bf16[64,128], index: 2, kind: input, shape index: {}]
  %s3 = inlined_call_operand.hbm [shape: bf16[64,128], index: 3, kind: input, shape index: {}]
  %s4 = inlined_call_operand.vmem [shape: f32[1,128], index: 4, kind: input, shape index: {}]
  %s5 = inlined_call_operand.vmem [shape: f32[1,128], index: 5, kind: input, shape index: {}]
  %s6 = inlined_call_operand.<no memory space> [shape: f32[1,1], index: 6, kind: input, shape index: {}]
  %s7 = inlined_call_operand.vmem [shape: f32[32,1], index: 7, kind: output, shape index: {}]
  %s8 = sld [smem:[#allocation0]]
  $region77: #{tpu_custom_call.1} parent=0
    _
  %s10 = ssub.s32 1, %s8
  %s11 = scalar_select 0, %s10, %s8
  %12 = sst [smem:[#allocation2]] %s6
  $region1: #{tpu_custom_call.1} parent=0
    #allocation3 [shape = 'u8[8192]{0}', space=vmem, size = 0x2000, scoped, tag = 'input window, operand 0']
    #allocation4 [shape = 's32[2]{0}', space=sflag, size = 0x8, scoped, tag = 'scoped memory for tpu_custom_call.1']
    #allocation5 [shape = 'u8[8192]{0}', space=vmem, size = 0x2000, scoped, tag = 'input window, operand 1']
    #allocation6 [shape = 's32[2]{0}', space=sflag, size = 0x8, scoped, tag = 'scoped memory for tpu_custom_call.1']
    #allocation7 [shape = 'u8[16384]{0}', space=vmem, size = 0x4000, scoped, tag = 'input window, operand 2, single buffered']
    #allocation8 [shape = 'u8[16384]{0}', space=vmem, size = 0x4000, scoped, tag = 'input window, operand 3, single buffered']
    #allocation9 [shape = 's32[1]{0}', space=sflag, size = 0x4, scoped, tag = 'scoped memory for tpu_custom_call.1']
    %13 = vsyncpa [#allocation4], 0
    %s14 = scalar_lea.sflag [#allocation4], 1
    %15 = vsyncpa %s14, 0
    %16 = vsyncpa [#allocation6], 0
    %s17 = scalar_lea.sflag [#allocation6], 1
    %18 = vsyncpa %s17, 0
    %19 = vsyncpa [#allocation9], 0
    loop: start=0, step=1, limit=4
    $region2: #{tpu_custom_call.1} parent=1 // loop_pre_header
      _
    $region3: #{tpu_custom_call.1} parent=1 // loop_header
      %s21 = sphi 0, %s25
      %p22 = scmp.ge.s32.totalorder %s21, 4
      %s31 = sphi 0, %s33
      %s34 = sphi 0, %s31
      %s35 = sphi 0, %s34
      %s51 = sphi 0, %s35
      %s57 = sphi 0, %s59
      %s60 = sphi 0, %s57
      %s61 = sphi 0, %s60
      %s77 = sphi 0, %s61
      %s81 = sphi 0, %s81
      %s83 = sphi 0, %s81
      %s84 = sphi 0, %s83
      %s98 = sphi 0, %s84
      %s102 = sphi 0, %s102
      %s104 = sphi 0, %s102
      %s105 = sphi 0, %s104
      %s119 = sphi 0, %s105
      %s123 = sphi 0, %s123
      %s125 = sphi 0, %s123
      %s126 = sphi 0, %s125
      %s140 = sphi 0, %s126
      %s144 = sphi 0, %s144
      %s146 = sphi 0, %s144
      %s147 = sphi 0, %s146
      %s161 = sphi 0, %s147
      %s165 = sphi 0, %s165
      %s167 = sphi 0, %s165
      %s168 = sphi 0, %s167
      %s182 = sphi 0, %s168
      %s188 = sphi 0, %s190
      %s191 = sphi 0, %s188
      %s192 = sphi 0, %s191
      %s208 = sphi 0, %s192
    $region4: #{tpu_custom_call.1} parent=1 // loop_header_branch
      %24 = sbr.rel (%p22) target = $region8
    $region5: #{tpu_custom_call.1} parent=1 // loop_body
      %s26 = ssub.s32 %s21, 1
      %s27 = ssub.s32 %s21, 2
      %s28 = sadd.s32 %s21, 1
      %s29 = ssub.s32 %s21, %s28
      %p30 = scmp.eq.s32.totalorder %s29, 0
      %s32 = sadd.s32 %s31, 1
      %s33 = scalar_select %p30, %s31, %s32
      %p36 = pneg %p30
      %p37 = scmp.eq.s32.totalorder %s21, 1
      %p38 = por %p36, %p37
      %p39 = scmp.ne.s32.totalorder %s31, %s34
      %p40 = scmp.eq.s32.totalorder %s21, 0
      %p41 = por %p39, %p40
      %p42 = scmp.ne.s32.totalorder %s31, %s34
      %p43 = scmp.eq.s32.totalorder %s26, 1
      %p44 = por %p42, %p43
      %p45 = scmp.ne.s32.totalorder %s34, %s35
      %p46 = scmp.eq.s32.totalorder %s26, 0
      %p47 = por %p45, %p46
      %p48 = scmp.ne.s32.totalorder %s34, %s35
      %p49 = scmp.eq.s32.totalorder %s27, 1
      %p50 = por %p48, %p49
      %p52 = scmp.ne.s32.totalorder %s35, %s51
      %p53 = scmp.eq.s32.totalorder %s27, 0
      %p54 = por %p52, %p53
      %s55 = ssub.s32 %s21, %s28
      %p56 = scmp.eq.s32.totalorder %s55, 0
      %s58 = sadd.s32 %s57, 1
      %s59 = scalar_select %p56, %s57, %s58
      %p62 = pneg %p56
      %p63 = scmp.eq.s32.totalorder %s21, 1
      %p64 = por %p62, %p63
      %p65 = scmp.ne.s32.totalorder %s57, %s60
      %p66 = scmp.eq.s32.totalorder %s21, 0
      %p67 = por %p65, %p66
      %p68 = scmp.ne.s32.totalorder %s57, %s60
      %p69 = scmp.eq.s32.totalorder %s26, 1
      %p70 = por %p68, %p69
      %p71 = scmp.ne.s32.totalorder %s60, %s61
      %p72 = scmp.eq.s32.totalorder %s26, 0
      %p73 = por %p71, %p72
      %p74 = scmp.ne.s32.totalorder %s60, %s61
      %p75 = scmp.eq.s32.totalorder %s27, 1
      %p76 = por %p74, %p75
      %p78 = scmp.ne.s32.totalorder %s61, %s77
      %p79 = scmp.eq.s32.totalorder %s27, 0
      %p80 = por %p78, %p79
      %s82 = sadd.s32 %s81, 1
      %p85 = scmp.eq.s32.totalorder %s21, 1
      %p86 = scmp.ne.s32.totalorder %s81, %s83
      %p87 = scmp.eq.s32.totalorder %s21, 0
      %p88 = por %p86, %p87
      %p89 = scmp.ne.s32.totalorder %s81, %s83
      %p90 = scmp.eq.s32.totalorder %s26, 1
      %p91 = por %p89, %p90
      %p92 = scmp.ne.s32.totalorder %s83, %s84
      %p93 = scmp.eq.s32.totalorder %s26, 0
      %p94 = por %p92, %p93
      %p95 = scmp.ne.s32.totalorder %s83, %s84
      %p96 = scmp.eq.s32.totalorder %s27, 1
      %p97 = por %p95, %p96
      %p99 = scmp.ne.s32.totalorder %s84, %s98
      %p100 = scmp.eq.s32.totalorder %s27, 0
      %p101 = por %p99, %p100
      %s103 = sadd.s32 %s102, 1
      %p106 = scmp.eq.s32.totalorder %s21, 1
      %p107 = scmp.ne.s32.totalorder %s102, %s104
      %p108 = scmp.eq.s32.totalorder %s21, 0
      %p109 = por %p107, %p108
      %p110 = scmp.ne.s32.totalorder %s102, %s104
      %p111 = scmp.eq.s32.totalorder %s26, 1
      %p112 = por %p110, %p111
      %p113 = scmp.ne.s32.totalorder %s104, %s105
      %p114 = scmp.eq.s32.totalorder %s26, 0
      %p115 = por %p113, %p114
      %p116 = scmp.ne.s32.totalorder %s104, %s105
      %p117 = scmp.eq.s32.totalorder %s27, 1
      %p118 = por %p116, %p117
      %p120 = scmp.ne.s32.totalorder %s105, %s119
      %p121 = scmp.eq.s32.totalorder %s27, 0
      %p122 = por %p120, %p121
      %s124 = sadd.s32 %s123, 1
      %p127 = scmp.eq.s32.totalorder %s21, 1
      %p128 = scmp.ne.s32.totalorder %s123, %s125
      %p129 = scmp.eq.s32.totalorder %s21, 0
      %p130 = por %p128, %p129
      %p131 = scmp.ne.s32.totalorder %s123, %s125
      %p132 = scmp.eq.s32.totalorder %s26, 1
      %p133 = por %p131, %p132
      %p134 = scmp.ne.s32.totalorder %s125, %s126
      %p135 = scmp.eq.s32.totalorder %s26, 0
      %p136 = por %p134, %p135
      %p137 = scmp.ne.s32.totalorder %s125, %s126
      %p138 = scmp.eq.s32.totalorder %s27, 1
      %p139 = por %p137, %p138
      %p141 = scmp.ne.s32.totalorder %s126, %s140
      %p142 = scmp.eq.s32.totalorder %s27, 0
      %p143 = por %p141, %p142
      %s145 = sadd.s32 %s144, 1
      %p148 = scmp.eq.s32.totalorder %s21, 1
      %p149 = scmp.ne.s32.totalorder %s144, %s146
      %p150 = scmp.eq.s32.totalorder %s21, 0
      %p151 = por %p149, %p150
      %p152 = scmp.ne.s32.totalorder %s144, %s146
      %p153 = scmp.eq.s32.totalorder %s26, 1
      %p154 = por %p152, %p153
      %p155 = scmp.ne.s32.totalorder %s146, %s147
      %p156 = scmp.eq.s32.totalorder %s26, 0
      %p157 = por %p155, %p156
      %p158 = scmp.ne.s32.totalorder %s146, %s147
      %p159 = scmp.eq.s32.totalorder %s27, 1
      %p160 = por %p158, %p159
      %p162 = scmp.ne.s32.totalorder %s147, %s161
      %p163 = scmp.eq.s32.totalorder %s27, 0
      %p164 = por %p162, %p163
      %s166 = sadd.s32 %s165, 1
      %p169 = scmp.eq.s32.totalorder %s21, 1
      %p170 = scmp.ne.s32.totalorder %s165, %s167
      %p171 = scmp.eq.s32.totalorder %s21, 0
      %p172 = por %p170, %p171
      %p173 = scmp.ne.s32.totalorder %s165, %s167
      %p174 = scmp.eq.s32.totalorder %s26, 1
      %p175 = por %p173, %p174
      %p176 = scmp.ne.s32.totalorder %s167, %s168
      %p177 = scmp.eq.s32.totalorder %s26, 0
      %p178 = por %p176, %p177
      %p179 = scmp.ne.s32.totalorder %s167, %s168
      %p180 = scmp.eq.s32.totalorder %s27, 1
      %p181 = por %p179, %p180
      %p183 = scmp.ne.s32.totalorder %s168, %s182
      %p184 = scmp.eq.s32.totalorder %s27, 0
      %p185 = por %p183, %p184
      %s186 = ssub.s32 %s21, %s28
      %p187 = scmp.eq.s32.totalorder %s186, 0
      %s189 = sadd.s32 %s188, 1
      %s190 = scalar_select %p187, %s188, %s189
      %p193 = pneg %p187
      %p194 = scmp.eq.s32.totalorder %s21, 1
      %p195 = por %p193, %p194
      %p196 = scmp.ne.s32.totalorder %s188, %s191
      %p197 = scmp.eq.s32.totalorder %s21, 0
      %p198 = por %p196, %p197
      %p199 = scmp.ne.s32.totalorder %s188, %s191
      %p200 = scmp.eq.s32.totalorder %s26, 1
      %p201 = por %p199, %p200
      %p202 = scmp.ne.s32.totalorder %s191, %s192
      %p203 = scmp.eq.s32.totalorder %s26, 0
      %p204 = por %p202, %p203
      %p205 = scmp.ne.s32.totalorder %s191, %s192
      %p206 = scmp.eq.s32.totalorder %s27, 1
      %p207 = por %p205, %p206
      %p209 = scmp.ne.s32.totalorder %s192, %s208
      %p210 = scmp.eq.s32.totalorder %s27, 0
      %p211 = por %p209, %p210
      %p212 = scmp.le.s32.totalorder 1, %s21
      %p213 = scmp.lt.s32.totalorder %s21, 3
      %p214 = pnand %p212, %p213
      %p215 = pneg %p214
      // Predicated region
      $region9: #{tpu_custom_call.1} parent=5 // pred_check
        _
      $region10: #{tpu_custom_call.1} parent=5 // pred_check_branch
        %217 = sbr.rel (%p214) target = $region12
      $region11: #{tpu_custom_call.1} parent=5 // pred_region
        %s218 = ssub.s32 %s21, 1
        // Predicated region
        $region13: #{tpu_custom_call.1} parent=11 // pred_check
          %p219 = pneg %p94
        $region14: #{tpu_custom_call.1} parent=11 // pred_check_branch
          %221 = sbr.rel (%p219) target = $region16
        $region15: #{tpu_custom_call.1} parent=11 // pred_region
          %223 = vsyncadd [#allocation6], 0
          %s224 = sshll.u32 %s2, 4
          %s225 = int_to_ptr.hbm [resolvable:$true] %s224
          %s226 = sshll.u32 [#allocation7], 4
          %s227 = int_to_ptr.vmem [resolvable:$true] %s226
          %232 = dma.hbm_to_vmem [thread:$0]  %s225, 512, %s227, [#allocation6], 64, 64, 4
        $region16: #{tpu_custom_call.1} parent=11 // pred_fallthru
          _
        // Predicated region
        $region17: #{tpu_custom_call.1} parent=11 // pred_check
          %p233 = pneg %p115
        $region18: #{tpu_custom_call.1} parent=11 // pred_check_branch
          %235 = sbr.rel (%p233) target = $region20
        $region19: #{tpu_custom_call.1} parent=11 // pred_region
          %237 = vsyncadd [#allocation9], 0
          %s238 = sshll.u32 %s3, 4
          %s239 = int_to_ptr.hbm [resolvable:$true] %s238
          %s240 = sshll.u32 [#allocation8], 4
          %s241 = int_to_ptr.vmem [resolvable:$true] %s240
          %246 = dma.hbm_to_vmem [thread:$0]  %s239, 512, %s241, [#allocation9], 64, 64, 4
        $region20: #{tpu_custom_call.1} parent=11 // pred_fallthru
          _
        // Predicated region
        $region21: #{tpu_custom_call.1} parent=11 // pred_check
          %p247 = pneg %p136
        $region22: #{tpu_custom_call.1} parent=11 // pred_check_branch
          %249 = sbr.rel (%p247) target = $region24
        $region23: #{tpu_custom_call.1} parent=11 // pred_region
          _
        $region24: #{tpu_custom_call.1} parent=11 // pred_fallthru
          _
        // Predicated region
        $region25: #{tpu_custom_call.1} parent=11 // pred_check
          %p250 = pneg %p157
        $region26: #{tpu_custom_call.1} parent=11 // pred_check_branch
          %252 = sbr.rel (%p250) target = $region28
        $region27: #{tpu_custom_call.1} parent=11 // pred_region
          _
        $region28: #{tpu_custom_call.1} parent=11 // pred_fallthru
          _
        // Predicated region
        $region29: #{tpu_custom_call.1} parent=11 // pred_check
          %p253 = pneg %p178
        $region30: #{tpu_custom_call.1} parent=11 // pred_check_branch
          %255 = sbr.rel (%p253) target = $region32
        $region31: #{tpu_custom_call.1} parent=11 // pred_region
          _
        $region32: #{tpu_custom_call.1} parent=11 // pred_fallthru
          _
      $region12: #{tpu_custom_call.1} parent=5 // pred_fallthru
        _
      %p256 = scmp.lt.s32.totalorder %s21, 2
      // Predicated region
      $region33: #{tpu_custom_call.1} parent=5 // pred_check
        %p257 = pneg %p256
      $region34: #{tpu_custom_call.1} parent=5 // pred_check_branch
        %259 = sbr.rel (%p257) target = $region36
      $region35: #{tpu_custom_call.1} parent=5 // pred_region
        // Predicated region
        $region37: #{tpu_custom_call.1} parent=35 // pred_check
          %p260 = pneg %p41
        $region38: #{tpu_custom_call.1} parent=35 // pred_check_branch
          %262 = sbr.rel (%p260) target = $region40
        $region39: #{tpu_custom_call.1} parent=35 // pred_region
          %s263 = sand.u32 %s31, 1
          %s264 = scalar_lea.sflag [#allocation4], %s263
          %s265 = sand.u32 %s31, 1
          %s266 = smul.addr %s265, 8
          %s267 = scalar_lea.vmem [#allocation3], %s266
          %s268 = smul.u32 2, %s21
          %270 = vsyncadd %s264, 0
          %s271 = smul.addr %s268, 4
          %s272 = scalar_lea.hbm %s0, %s271
          %s273 = sshll.u32 %s272, 4
          %s274 = int_to_ptr.hbm [resolvable:$true] %s273
          %s275 = sshll.u32 %s267, 4
          %s276 = int_to_ptr.vmem [resolvable:$true] %s275
          %281 = dma.hbm_to_vmem [thread:$0]  %s274, 128, %s276, %s264, 64, 64, 4
        $region40: #{tpu_custom_call.1} parent=35 // pred_fallthru
          _
        // Predicated region
        $region41: #{tpu_custom_call.1} parent=35 // pred_check
          %p282 = pneg %p67
        $region42: #{tpu_custom_call.1} parent=35 // pred_check_branch
          %284 = sbr.rel (%p282) target = $region44
        $region43: #{tpu_custom_call.1} parent=35 // pred_region
          %s285 = sand.u32 %s21, 1
          %s286 = scalar_lea.sflag [#allocation6], %s285
          %s287 = sand.u32 %s57, 1
          %s288 = smul.addr %s287, 8
          %s289 = scalar_lea.vmem [#allocation5], %s288
          %s290 = smul.u32 2, %s21
          %292 = vsyncadd %s286, 0
          %s293 = smul.addr %s290, 4
          %s294 = scalar_lea.hbm %s1, %s293
          %s295 = sshll.u32 %s294, 4
          %s296 = int_to_ptr.hbm [resolvable:$true] %s295
          %s297 = sshll.u32 %s289, 4
          %s298 = int_to_ptr.vmem [resolvable:$true] %s297
          %303 = dma.hbm_to_vmem [thread:$0]  %s296, 128, %s298, %s286, 64, 64, 4
        $region44: #{tpu_custom_call.1} parent=35 // pred_fallthru
          _
      $region36: #{tpu_custom_call.1} parent=5 // pred_fallthru
        _
      %p304 = scmp.le.s32.totalorder 1, %s21
      %p305 = scmp.lt.s32.totalorder %s21, 3
      %p306 = pnand %p304, %p305
      %p307 = pneg %p306
      // Predicated region
      $region45: #{tpu_custom_call.1} parent=5 // pred_check
        _
      $region46: #{tpu_custom_call.1} parent=5 // pred_check_branch
        %309 = sbr.rel (%p306) target = $region48
      $region47: #{tpu_custom_call.1} parent=5 // pred_region
        %s310 = ssub.s32 %s21, 1
        %s311 = sand.u32 %s34, 1
        %s312 = scalar_lea.sflag [#allocation4], %s311
        %s313 = sand.u32 %s34, 1
        %s314 = smul.addr %s313, 8
        %s315 = scalar_lea.vmem [#allocation3], %s314
        // Predicated region
        $region49: #{tpu_custom_call.1} parent=47 // pred_check
          %p316 = pneg %p47
        $region50: #{tpu_custom_call.1} parent=47 // pred_check_branch
          %318 = sbr.rel (%p316) target = $region52
        $region51: #{tpu_custom_call.1} parent=47 // pred_region
          %320 = dma.done %s312, 128
        $region52: #{tpu_custom_call.1} parent=47 // pred_fallthru
          _
        %s321 = sand.u32 %s26, 1
        %s322 = scalar_lea.sflag [#allocation6], %s321
        %s323 = sand.u32 %s60, 1
        %s324 = smul.addr %s323, 8
        %s325 = scalar_lea.vmem [#allocation5], %s324
        // Predicated region
        $region53: #{tpu_custom_call.1} parent=47 // pred_check
          %p326 = pneg %p73
        $region54: #{tpu_custom_call.1} parent=47 // pred_check_branch
          %328 = sbr.rel (%p326) target = $region56
        $region55: #{tpu_custom_call.1} parent=47 // pred_region
          %330 = dma.done %s322, 128
        $region56: #{tpu_custom_call.1} parent=47 // pred_fallthru
          _
        // Predicated region
        $region57: #{tpu_custom_call.1} parent=47 // pred_check
          %p331 = pneg %p94
        $region58: #{tpu_custom_call.1} parent=47 // pred_check_branch
          %333 = sbr.rel (%p331) target = $region60
        $region59: #{tpu_custom_call.1} parent=47 // pred_region
          %335 = dma.done [#allocation6], 512
        $region60: #{tpu_custom_call.1} parent=47 // pred_fallthru
          _
        // Predicated region
        $region61: #{tpu_custom_call.1} parent=47 // pred_check
          %p336 = pneg %p115
        $region62: #{tpu_custom_call.1} parent=47 // pred_check_branch
          %338 = sbr.rel (%p336) target = $region64
        $region63: #{tpu_custom_call.1} parent=47 // pred_region
          %340 = dma.done [#allocation9], 512
        $region64: #{tpu_custom_call.1} parent=47 // pred_fallthru
          _
        %s341 = sand.u32 %s34, 1
        %s342 = scalar_lea.sflag [#allocation4], %s341
        %s343 = sand.u32 %s34, 1
        %s344 = smul.addr %s343, 8
        %s345 = scalar_lea.vmem [#allocation3], %s344
        %p346 = pneg %p47
        %p347 = pneg %p44
        %s348 = sand.u32 %s26, 1
        %s349 = scalar_lea.sflag [#allocation6], %s348
        %s350 = sand.u32 %s60, 1
        %s351 = smul.addr %s350, 8
        %s352 = scalar_lea.vmem [#allocation5], %s351
        %p353 = pneg %p73
        %p354 = pneg %p70
        %p355 = pneg %p94
        %p356 = pneg %p91
        %p357 = pneg %p115
        %p358 = pneg %p112
        %p359 = pneg %p136
        %p360 = pneg %p133
        %p361 = pneg %p157
        %p362 = pneg %p154
        %p363 = pneg %p178
        %p364 = pneg %p175
        %p365 = pneg %p204
        %p366 = pneg %p201
        %s367 = smul.u32 2, %s26
        %p368 = scmp.lt.s32.totalorder %s367, 3
        %s369 = scalar_select %p368, %s367, 3
        %s370 = smul.addr %s369, 8
        %s371 = scalar_lea.vmem %s7, %s370
        %s372 = smul.u32 2, %s26
        %s373 = smul.u32 2, %s26
        %s374 = smul.u32 2, %s26
        %p375 = scmp.lt.s32.totalorder %s374, 3
        %s376 = scalar_select %p375, %s374, 3
        %s377 = smul.addr %s376, 8
        %s378 = scalar_lea.vmem %s7, %s377
        %s379 = smul.u32 2, %s26
        %v381 = vld [vmem:[%s315] sm:$0xf]
        %v382 = vld [vmem:[%s315 + $0x4] sm:$0xf]
        %v383 = vld [vmem:[#allocation7] sm:$0xf]
        %v384 = vld [vmem:[#allocation7 + $0x4] sm:$0xf]
        %v385 = vld [vmem:[#allocation7 + $0x8] sm:$0xf]
        %v386 = vld [vmem:[#allocation7 + $0xc] sm:$0xf]
        %v387 = vld [vmem:[#allocation7 + $0x10] sm:$0xf]
        %v388 = vld [vmem:[#allocation7 + $0x14] sm:$0xf]
        %v389 = vld [vmem:[#allocation7 + $0x18] sm:$0xf]
        %v390 = vld [vmem:[#allocation7 + $0x1c] sm:$0xf]
        %v391 = vld [vmem:[%s325] sm:$0xf]
        %v392 = vld [vmem:[%s325 + $0x4] sm:$0xf]
        %v393 = vld [vmem:[#allocation8] sm:$0xf]
        %v394 = vld [vmem:[#allocation8 + $0x4] sm:$0xf]
        %v395 = vld [vmem:[#allocation8 + $0x8] sm:$0xf]
        %v396 = vld [vmem:[#allocation8 + $0xc] sm:$0xf]
        %v397 = vld [vmem:[#allocation8 + $0x10] sm:$0xf]
        %v398 = vld [vmem:[#allocation8 + $0x14] sm:$0xf]
        %v399 = vld [vmem:[#allocation8 + $0x18] sm:$0xf]
        %v400 = vld [vmem:[#allocation8 + $0x1c] sm:$0xf]
        %v403 = vunpack.c.l.b16 %v391
        %v404 = vunpack.c.l.b16 %v392
        %v405 = vpack.c.b16 %v404, %v403
        %v414 = vunpack.c.l.b16 %v393
        %v415 = vunpack.c.l.b16 %v394
        %v416 = vunpack.c.l.b16 %v395
        %v417 = vunpack.c.l.b16 %v396
        %v418 = vunpack.c.l.b16 %v397
        %v419 = vunpack.c.l.b16 %v398
        %v420 = vunpack.c.l.b16 %v399
        %v421 = vunpack.c.l.b16 %v400
        %v422 = vpack.c.b16 %v415, %v414
        %v423 = vpack.c.b16 %v417, %v416
        %v424 = vpack.c.b16 %v419, %v418
        %v425 = vpack.c.b16 %v421, %v420
        %vm430 = vcmask 523264
        %v432 = vsel %vm430, %v405, 0
        %434 = vmatpush.bf16.msra.mxu0 0
        %435 = vmatpush.bf16.msra.mxu0 0
        %436 = vmatpush.bf16.msra.mxu0 0
        %437 = vmatpush.bf16.msra.mxu0 0
        %438 = vmatpush.bf16.msra.mxu0 %v425
        %439 = vmatpush.bf16.msra.mxu0 %v424
        %440 = vmatpush.bf16.msra.mxu0 %v423
        %441 = vmatpush.bf16.msra.mxu0 %v422
        %442 = vmatmul.bf16.gmra.mxu0 %v432
        %v443 = vpop.f32.mrf.mxu0
        %v444 = vadd.f32 0.0, %v443
        %v445 = vpop.f32.mrf.mxu0
        %v446 = vadd.f32 0.0, %v445
        %447 = vdwg.mxu0
        %v450 = vunpack.c.l.b16 %v381
        %v451 = vunpack.c.l.b16 %v382
        %v452 = vpack.c.b16 %v451, %v450
        %v461 = vunpack.c.l.b16 %v383
        %v462 = vunpack.c.l.b16 %v384
        %v463 = vunpack.c.l.b16 %v385
        %v464 = vunpack.c.l.b16 %v386
        %v465 = vunpack.c.l.b16 %v387
        %v466 = vunpack.c.l.b16 %v388
        %v467 = vunpack.c.l.b16 %v389
        %v468 = vunpack.c.l.b16 %v390
        %v469 = vpack.c.b16 %v462, %v461
        %v470 = vpack.c.b16 %v464, %v463
        %v471 = vpack.c.b16 %v466, %v465
        %v472 = vpack.c.b16 %v468, %v467
        %v478 = vsel %vm430, %v452, 0
        %480 = vmatpush.bf16.msra.mxu0 0
        %481 = vmatpush.bf16.msra.mxu0 0
        %482 = vmatpush.bf16.msra.mxu0 0
        %483 = vmatpush.bf16.msra.mxu0 0
        %484 = vmatpush.bf16.msra.mxu0 %v472
        %485 = vmatpush.bf16.msra.mxu0 %v471
        %486 = vmatpush.bf16.msra.mxu0 %v470
        %487 = vmatpush.bf16.msra.mxu0 %v469
        %488 = vmatmul.bf16.gmra.mxu0 %v478
        %v489 = vpop.f32.mrf.mxu0
        %v490 = vadd.f32 %v444, %v489
        %v491 = vpop.f32.mrf.mxu0
        %v492 = vadd.f32 %v446, %v491
        %493 = vdwg.mxu0
        %v494 = vld [vmem:[%s4] sm:$0x1]
        %v496 = vperm.slane %v494, 0
        %v498 = vadd.f32 %v490, %v496
        %v499 = vadd.f32 %v492, %v496
        %v500 = vmax.f32 %v498, 0.0
        %v501 = vmax.f32 %v499, 0.0
        %v502 = vld [vmem:[%s5] sm:$0x1]
        %v504 = vperm.slane %v502, 0
        %v506 = vmul.f32 %v500, %v504
        %v507 = vmul.f32 %v501, %v504
        %508 = vadd.xlane.f32.xlu0 %v506
        %v509 = vpop.xlane.xlu0 %508
        %510 = vadd.xlane.f32.xlu0 %v507
        %v511 = vpop.xlane.xlu0 %510
        %s512 = sld [smem:[#allocation2]]
        %v513 = vstv %s512
        %v514 = vadd.f32 %v509, %v513
        %v515 = vadd.f32 %v511, %v513
        %vm516 = vcmask 7168
        %517 = vst.msk [vmem:[%s378] sm:$0xff] %vm516, %v514
        %518 = vst.msk [vmem:[%s378 + $0x8] sm:$0xff] %vm516, %v515
        %s519 = smul.u32 2, %s26
        %p520 = scmp.lt.s32.totalorder %s519, 3
        %s521 = scalar_select %p520, %s519, 3
        %s522 = smul.addr %s521, 8
        %s523 = scalar_lea.vmem %s7, %s522
        // Predicated region
        $region65: #{tpu_custom_call.1} parent=47 // pred_check
          %p524 = pneg %p201
        $region66: #{tpu_custom_call.1} parent=47 // pred_check_branch
          %526 = sbr.rel (%p524) target = $region68
        $region67: #{tpu_custom_call.1} parent=47 // pred_region
          %s527 = smul.u32 2, %s26
        $region68: #{tpu_custom_call.1} parent=47 // pred_fallthru
          _
      $region48: #{tpu_custom_call.1} parent=5 // pred_fallthru
        _
      %p528 = scmp.le.s32.totalorder 2, %s21
      // Predicated region
      $region69: #{tpu_custom_call.1} parent=5 // pred_check
        %p529 = pneg %p528
      $region70: #{tpu_custom_call.1} parent=5 // pred_check_branch
        %531 = sbr.rel (%p529) target = $region72
      $region71: #{tpu_custom_call.1} parent=5 // pred_region
        %s532 = ssub.s32 %s21, 2
        // Predicated region
        $region73: #{tpu_custom_call.1} parent=71 // pred_check
          %p533 = pneg %p207
        $region74: #{tpu_custom_call.1} parent=71 // pred_check_branch
          %535 = sbr.rel (%p533) target = $region76
        $region75: #{tpu_custom_call.1} parent=71 // pred_region
          %s536 = smul.u32 2, %s27
          %p537 = scmp.lt.s32.totalorder %s536, 3
          %s538 = scalar_select %p537, %s536, 3
          %s539 = smul.addr %s538, 8
          %s540 = scalar_lea.vmem %s7, %s539
        $region76: #{tpu_custom_call.1} parent=71 // pred_fallthru
          _
      $region72: #{tpu_custom_call.1} parent=5 // pred_fallthru
        _
    $region6: #{tpu_custom_call.1} parent=1 // loop_footer
      %s25 = sadd.s32 1, %s21
    $region7: #{tpu_custom_call.1} parent=1 // loop_footer_branch
      %20 = sbr.rel target = $region3
    $region8: #{tpu_custom_call.1} parent=1 // loop_exit
      _
    %541 = vsyncpa [#allocation4], 1
    %s542 = scalar_lea.sflag [#allocation4], 1
    %543 = vsyncpa %s542, 1
    %544 = vsyncpa [#allocation6], 1
    %s545 = scalar_lea.sflag [#allocation6], 1
    %546 = vsyncpa %s545, 1
    %547 = vsyncpa [#allocation9], 1

</llo_original>
